<compile_context>
chip_gen: v6e
topology: v6e:2x2x1
jax: 0.10.0
libtpu: 0.0.40
codegen_flags: <defaults>
</compile_context>

<pallas_src>
import functools
import math

import jax
import jax.numpy as jnp
from jax.experimental import pallas as pl
from jax.experimental.pallas import tpu as pltpu

_TARGET_BLOCK_BYTES = 4 * 1024 * 1024    # per-block budget (v7x safe)
_VMEM_LIMIT_BYTES = 48 * 1024 * 1024


def _round_up(x, m):
    return ((x + m - 1) // m) * m


# --------------------------------------------------------------------------
# Kernels
# --------------------------------------------------------------------------
def _copy_kernel(x_ref, src_ref, o_ref):
    # Pure copy; x is present only for input/output aliasing and never read.
    del x_ref
    o_ref[...] = src_ref[...]


def _lane_blend_kernel(x_ref, src_ref, o_ref, *, c0, c1, tc, cb0):
    # Block covers `tc` lanes of the (B, C) view; lanes outside [c0, c1)
    # keep x (only boundary blocks actually have a partially-false mask).
    col0 = (cb0 + pl.program_id(1)) * tc
    lane = col0 + jax.lax.broadcasted_iota(jnp.int32, (1, tc), 1)
    keep_src = (lane >= c0) & (lane < c1)
    o_ref[...] = jnp.where(keep_src, src_ref[...], x_ref[...])


# --------------------------------------------------------------------------
# Tiling heuristics
# --------------------------------------------------------------------------
def _choose_tiles(B, C, Ls, c0, itemsize):
    """Block shape (tb, tc) for the 2-D lane-range scatter."""
    sub = max(8, 32 // itemsize)            # sublane rows per packed (8,128) tile
    if C < 128:
        tc = C                              # full (legal) lane extent
    else:
        lane_budget = _TARGET_BLOCK_BYTES // (max(1, min(B, sub)) * itemsize)
        tc = max(128, min(_round_up(Ls, 128),
                          (lane_budget // 128) * 128,
                          (C // 128) * 128))
        if c0 % tc != 0 and c0 % 128 == 0:
            # A 128-multiple tile width dividing c0 removes the src pad; only
            # take it if it does not explode the column-block count.
            g = math.gcd(c0, tc)
            if (Ls + g - 1) // g <= 256:
                tc = g
    rows_budget = max(1, _TARGET_BLOCK_BYTES // (tc * itemsize))
    if B <= sub:
        tb = B
    else:
        tb = min((B // sub) * sub, max(sub, (rows_budget // sub) * sub))
    return tb, tc


# --------------------------------------------------------------------------
# step == 1 : contiguous lane-range scatter on a (B, C) view
# --------------------------------------------------------------------------
def _contiguous_scatter_2d(x2, s2, c0, length):
    """Scatter s2 into columns [c0, c0+length) of every row of x2."""
    B, C = x2.shape
    c1 = c0 + length
    itemsize = jnp.dtype(x2.dtype).itemsize
    tb, tc = _choose_tiles(B, C, length, c0, itemsize)

    cb0, cb1 = c0 // tc, (c1 - 1) // tc
    ncb = cb1 - cb0 + 1
    nbb = pl.cdiv(B, tb)
    front = c0 - cb0 * tc
    aligned = front == 0 and (c1 % tc == 0 or c1 == C)

    if front:
        # Only when the range start is not tile-aligned; the pad lanes are
        # never selected by the in-kernel mask.
        s2 = jnp.pad(s2, ((0, 0), (front, 0)))

    src_spec = pl.BlockSpec((tb, tc), lambda ib, j: (ib, j))
    out_spec = pl.BlockSpec((tb, tc), lambda ib, j: (ib, cb0 + j))

    if aligned:
        # Pure copy; x enters only for aliasing -> constant block, fetched once.
        kernel = _copy_kernel
        x_spec = pl.BlockSpec((tb, tc), lambda ib, j: (0, 0))
    else:
        kernel = functools.partial(_lane_blend_kernel,
                                   c0=c0, c1=c1, tc=tc, cb0=cb0)
        if ncb == 1:
            x_spec = pl.BlockSpec((tb, tc), lambda ib, j: (ib, cb0))
        else:
            # Interior column blocks never use x (mask is all-src there); clamp
            # them onto the leading boundary block so x is DMA'd at most twice
            # per batch block.
            x_spec = pl.BlockSpec(
                (tb, tc),
                lambda ib, j: (ib, cb0 + (j // (ncb - 1)) * (ncb - 1)))

    return pl.pallas_call(
        kernel,
        out_shape=jax.ShapeDtypeStruct((B, C), x2.dtype),
        grid=(nbb, ncb),
        in_specs=[x_spec, src_spec],
        out_specs=out_spec,
        input_output_aliases={0: 0},
        compiler_params=pltpu.CompilerParams(
            dimension_semantics=("parallel", "parallel"),
            vmem_limit_bytes=_VMEM_LIMIT_BYTES),
    )(x2, s2)


# --------------------------------------------------------------------------
# step > 1 : general strided fallback on a (B, D, 1, T) view
# --------------------------------------------------------------------------
def _strided_scatter(x4, s4, start, step):
    """One scattered position per grid step; batch dim as dense sublanes."""
    # TODO(synk): batch multiple scattered positions per block (strided
    # sublane DMA) for large step>1 scatters that don't hit the reshape path.
    B, D, _, T = x4.shape
    L = s4.shape[1]
    itemsize = jnp.dtype(x4.dtype).itemsize
    sub = max(8, 32 // itemsize)
    rows_budget = max(1, _TARGET_BLOCK_BYTES // (T * itemsize))
    if B <= sub:
        tb = B
    else:
        tb = min((B // sub) * sub, max(sub, (rows_budget // sub) * sub))
    nbb = pl.cdiv(B, tb)

    return pl.pallas_call(
        _copy_kernel,
        out_shape=jax.ShapeDtypeStruct((B, D, 1, T), x4.dtype),
        grid=(nbb, L),
        in_specs=[
            # x enters only for aliasing; constant tiny block -> fetched once.
            pl.BlockSpec((1, 1, 1, T), lambda ib, i: (0, 0, 0, 0)),
            pl.BlockSpec((tb, 1, 1, T), lambda ib, i: (ib, i, 0, 0)),
        ],
        out_specs=pl.BlockSpec((tb, 1, 1, T),
                               lambda ib, i: (ib, start + i * step, 0, 0)),
        input_output_aliases={0: 0},
        compiler_params=pltpu.CompilerParams(
            dimension_semantics=("parallel", "parallel"),
            vmem_limit_bytes=_VMEM_LIMIT_BYTES),
    )(x4, s4)


# --------------------------------------------------------------------------
# Wrapper
# --------------------------------------------------------------------------
@functools.partial(jax.jit, static_argnames=("dim", "start", "end", "step"))
def _slice_scatter_impl(x, src, *, dim, start, end, step):
    shape = x.shape
    ndim = x.ndim
    moved = False
    if step > 1 and dim == ndim - 1 and ndim > 1:
        # Strided scatter along the minor axis: relayout once so blocks stay
        # lane-dense (the step==1 minor-axis case is lane-masked, no move).
        x = jnp.moveaxis(x, -1, 0)
        src = jnp.moveaxis(src, -1, 0)
        dim, moved = 0, True
        shape = x.shape

    D = shape[dim]
    L = src.shape[dim]
    B = math.prod(shape[:dim])
    T = math.prod(shape[dim + 1:])

    if step == 1:
        out = _contiguous_scatter_2d(x.reshape(B, D * T), src.reshape(B, L * T),
                                     start * T, L * T)
    elif D % step == 0 and start < step and L == D // step:
        # Every step-th element of the whole axis: contiguous lane range in a
        # (B*(D/step), step*T) view -> reuse the contiguous path.
        Q = D // step
        out = _contiguous_scatter_2d(x.reshape(B * Q, step * T),
                                     src.reshape(B * Q, T), start * T, T)
    else:
        out = _strided_scatter(x.reshape(B, D, 1, T), src.reshape(B, L, 1, T),
                               start, step)
    out = out.reshape(shape)
    if moved:
        out = jnp.moveaxis(out, 0, -1)
    return out


def slice_scatter(x, src, dim=0, start=None, end=None, step=1):
    """JAX/Pallas equivalent of torch.Tensor.slice_scatter (out-of-place).

    Note: callers that no longer need `x` should donate it (jit
    donate_argnums) so the aliased output reuses x's buffer with no copy.
    """
    ndim = x.ndim
    if ndim == 0:
        raise ValueError("slice_scatter requires x.ndim >= 1")
    dim = dim % ndim
    D = x.shape[dim]
    if step < 1:
        raise ValueError("slice_scatter requires step >= 1")
    # Python/torch slice semantics: handles None, negative and out-of-range.
    start_n, end_n, step_n = slice(start, end, step).indices(D)
    L = len(range(start_n, end_n, step_n))

    expected = list(x.shape)
    expected[dim] = L
    if tuple(src.shape) != tuple(expected):
        raise ValueError(f"src shape {src.shape} != slice shape {tuple(expected)}")
    if src.dtype != x.dtype:
        raise ValueError("src dtype must match x dtype")

    if L == 0:                       # empty slice -> x unchanged
        return x
    if step_n == 1 and L == D:       # full replacement along dim
        return src

    return _slice_scatter_impl(x, src, dim=dim, start=start_n, end=end_n,
                               step=step_n)


class SliceScatterModel:
    """Mirror of the PyTorch slice_scatter_model module."""

    def __init__(self, dim=0, start=None, end=None, step=1):
        self.dim, self.start, self.end, self.step = dim, start, end, step

    def __call__(self, x, src):
        return slice_scatter(x, src, self.dim, self.start, self.end, self.step)


# --------------------------------------------------------------------------
# Self-test
# --------------------------------------------------------------------------
def _reference(x, src, dim, start, end, step):
    idx = [slice(None)] * x.ndim
    idx[dim] = slice(start, end, step)
    return x.at[tuple(idx)].set(src)


def _check(name, out, ref):
    assert out.shape == ref.shape and out.dtype == ref.dtype, name
    assert jnp.array_equal(out, ref), f"{name} mismatch"


if __name__ == "__main__":
    key = jax.random.PRNGKey(0)
    ks = jax.random.split(key, 12)

    x = jax.random.normal(ks[0], (2, 4, 16, 16), dtype=jnp.float32)

    # 1. Strided slice along an interior dim (per-position fallback path).
    src = jax.random.normal(ks[1], (2, 4, 4, 16), dtype=jnp.float32)
    out = jax.block_until_ready(slice_scatter(x, src, dim=2, start=2, end=14, step=3))
    _check("strided interior", out, _reference(x, src, 2, 2, 14, 3))

    # 2. Module defaults (dim=0, start=None, end=None, step=1) -> full replace.
    model = SliceScatterModel()
    src = jax.random.normal(ks[2], (2, 4, 16, 16), dtype=jnp.float32)
    out = jax.block_until_ready(model(x, src))
    _check("defaults / full replace", out, _reference(x, src, 0, None, None, 1))

    # 3. Contiguous slice, negative torch-style bounds (aligned copy path).
    src = jax.random.normal(ks[3], (2, 2, 16, 16), dtype=jnp.float32)
    out = jax.block_until_ready(slice_scatter(x, src, dim=1, start=-3, end=-1))
    _check("contiguous dim=1", out, _reference(x, src, 1, -3, -1, 1))

    # 4. Contiguous slice along the leading dim.
    src = jax.random.normal(ks[4], (1, 4, 16, 16), dtype=jnp.float32)
    out = jax.block_until_ready(slice_scatter(x, src, dim=0, start=0, end=1))
    _check("contiguous dim=0", out, _reference(x, src, 0, 0, 1, 1))

    # 5. Strided slice along the last (lane) dim -> one-time relayout path.
    src = jax.random.normal(ks[5], (2, 4, 16, 4), dtype=jnp.float32)
    out = jax.block_until_ready(slice_scatter(x, src, dim=3, start=4, end=12, step=2))
    _check("strided last dim", out, _reference(x, src, 3, 4, 12, 2))

    # 6. Empty slice -> x unchanged.
    src = jnp.zeros((2, 0, 16, 16), dtype=jnp.float32)
    out = jax.block_until_ready(slice_scatter(x, src, dim=1, start=3, end=3))
    _check("empty slice", out, x)

    # 7. Misaligned contiguous slice (front pad + lane-mask blend path).
    src = jax.random.normal(ks[6], (2, 4, 6, 16), dtype=jnp.float32)
    out = jax.block_until_ready(slice_scatter(x, src, dim=2, start=3, end=9))
    _check("misaligned blend", out, _reference(x, src, 2, 3, 9, 1))

    # 8. Contiguous slice along the last dim (lane-masked, no relayout).
    src = jax.random.normal(ks[7], (2, 4, 16, 6), dtype=jnp.float32)
    out = jax.block_until_ready(slice_scatter(x, src, dim=3, start=5, end=11))
    _check("contiguous last dim", out, _reference(x, src, 3, 5, 11, 1))

    # 9. Every-2nd-element strided slice -> reduces to the contiguous path.
    src = jax.random.normal(ks[8], (2, 4, 8, 16), dtype=jnp.float32)
    out = jax.block_until_ready(slice_scatter(x, src, dim=2, start=1, end=None, step=2))
    _check("full-pattern stride", out, _reference(x, src, 2, 1, None, 2))

    # 10. Partial edge blocks (tb does not divide B) + bf16 sublane packing.
    xb = jax.random.normal(ks[9], (4, 5, 16, 16), dtype=jnp.bfloat16)
    srcb = jax.random.normal(ks[10], (4, 5, 6, 16), dtype=jnp.bfloat16)
    out = jax.block_until_ready(slice_scatter(xb, srcb, dim=2, start=3, end=9))
    _check("partial blocks bf16", out, _reference(xb, srcb, 2, 3, 9, 1))

    print("KERNEL_OK")
</pallas_src>

<mosaic_0001>
module attributes {stable_mosaic.version = 11 : i64} {
  func.func @_copy_kernel(%arg0: i32, %arg1: i32, %arg2: memref<1x1x1x16xf32, #tpu.memory_space<vmem>>, %arg3: memref<8x1x1x16xf32, #tpu.memory_space<vmem>>, %arg4: memref<8x1x1x16xf32, #tpu.memory_space<vmem>>) attributes {dimension_semantics = [#tpu.dimension_semantics<parallel>, #tpu.dimension_semantics<parallel>], iteration_bounds = array<i64: 1, 4>, scalar_prefetch = 0 : i64, scratch_operands = 0 : i64, tpu.core_type = #tpu.core_type<tc>, window_params = [{transform_indices = @transform_0, window_bounds = array<i64: 1, 1, 1, 16>}, {transform_indices = @transform_1, window_bounds = array<i64: 8, 1, 1, 16>}, {transform_indices = @transform_2, window_bounds = array<i64: 8, 1, 1, 16>}]} {
    %c0 = arith.constant 0 : index
    %c0_0 = arith.constant 0 : index
    %c0_1 = arith.constant 0 : index
    %c0_2 = arith.constant 0 : index
    %0 = vector.load %arg3[%c0, %c0_0, %c0_1, %c0_2] : memref<8x1x1x16xf32, #tpu.memory_space<vmem>>, vector<8x1x1x16xf32>
    %c0_3 = arith.constant 0 : index
    %c0_4 = arith.constant 0 : index
    %c0_5 = arith.constant 0 : index
    %c0_6 = arith.constant 0 : index
    %1 = vector.load %arg4[%c0_3, %c0_4, %c0_5, %c0_6] : memref<8x1x1x16xf32, #tpu.memory_space<vmem>>, vector<8x1x1x16xf32>
    tpu.vector_store %arg4[%c0_3, %c0_4, %c0_5, %c0_6], %0 {strides = array<i32>} : memref<8x1x1x16xf32, #tpu.memory_space<vmem>>, vector<8x1x1x16xf32>,
    return
  }
  func.func @transform_0(%arg0: i32, %arg1: i32) -> (i32, i32, i32, i32) {
    %c0_i32 = arith.constant 0 : i32
    %c0_i32_0 = arith.constant 0 : i32
    %c0_i32_1 = arith.constant 0 : i32
    %c0_i32_2 = arith.constant 0 : i32
    %c0_i32_3 = arith.constant 0 : i32
    return %c0_i32, %c0_i32_0, %c0_i32_1, %c0_i32_2 : i32, i32, i32, i32
  }
  func.func @transform_1(%arg0: i32, %arg1: i32) -> (i32, i32, i32, i32) {
    %c0_i32 = arith.constant 0 : i32
    %c0_i32_0 = arith.constant 0 : i32
    %c0_i32_1 = arith.constant 0 : i32
    return %arg0, %arg1, %c0_i32, %c0_i32_0 : i32, i32, i32, i32
  }
  func.func @transform_2(%arg0: i32, %arg1: i32) -> (i32, i32, i32, i32) {
    %c3_i32 = arith.constant 3 : i32
    %0 = arith.muli %arg1, %c3_i32 : i32
    %c2_i32 = arith.constant 2 : i32
    %1 = arith.addi %c2_i32, %0 : i32
    %c0_i32 = arith.constant 0 : i32
    %c0_i32_0 = arith.constant 0 : i32
    %c0_i32_1 = arith.constant 0 : i32
    return %arg0, %1, %c0_i32, %c0_i32_0 : i32, i32, i32, i32
  }
}

</mosaic_0001>

<llo_original>
// kernel: _slice_scatter_impl.1
$region0: #{_slice_scatter_impl.1}
  #allocation0 [shape = 'u32[]', space=smem, size = 0x4, offset = 0x4, fixed_abs, tag = 'smem constant byte address 0x4 - core index']
  #allocation1 [shape = 'u32[144,128]{1,0:T(1,128)}', space=vmem, size = 0x12000, scoped, tag = 'internal scratch']
  %s0 = inlined_call_operand.vmem [shape: f32[8,16,1,16], index: 0, kind: input, shape index: {}, may-alias: {0,2}]
  %s1 = inlined_call_operand.vmem [shape: f32[8,4,1,16], index: 1, kind: input, shape index: {}]
  %s2 = inlined_call_operand.vmem [shape: f32[8,16,1,16], index: 2, kind: output, shape index: {}, may-alias: {0,2}]
  %s3 = sld [smem:[#allocation0]]
  $region119: #{_slice_scatter_impl.1} parent=0
    _
  %s5 = ssub.s32 1, %s3
  %s6 = scalar_select 0, %s5, %s3
  $region1: #{_slice_scatter_impl.1} parent=0
    #allocation2 [shape = 'u8[8192]{0}', space=vmem, size = 0x2000, scoped, tag = 'input window, operand 1']
    #allocation3 [shape = 'u8[8192]{0}', space=vmem, size = 0x2000, scoped, tag = 'output window, operand 0']
    loop: start=0, step=1, limit=6
    $region2: #{_slice_scatter_impl.1} parent=1 // loop_pre_header
      _
    $region3: #{_slice_scatter_impl.1} parent=1 // loop_header
      %s8 = sphi 0, %s12
      %p9 = scmp.ge.s32.totalorder %s8, 6
      %s15 = sphi 0, %s27
      %s16 = sphi 0, %s23
      %s17 = sphi 0, %s15
      %s18 = sphi 0, %s16
      %s19 = sphi 0, %s17
      %s20 = sphi 0, %s18
      %s28 = sphi 0, %s28
      %s30 = sphi 0, %s28
      %s31 = sphi 0, %s30
      %s45 = sphi 0, %s31
      %s53 = sphi 0, %s55
      %s56 = sphi 0, %s53
      %s57 = sphi 0, %s56
      %s73 = sphi 0, %s57
      %s85 = sphi 0, %s87
      %s88 = sphi 0, %s85
      %s89 = sphi 0, %s88
      %s105 = sphi 0, %s89
    $region4: #{_slice_scatter_impl.1} parent=1 // loop_header_branch
      %11 = sbr.rel (%p9) target = $region8
    $region5: #{_slice_scatter_impl.1} parent=1 // loop_body
      %s13 = ssub.s32 %s8, 1
      %s14 = ssub.s32 %s8, 2
      %s21 = sadd.s32 1, %s16
      %p22 = scmp.ge.s32.totalorder %s21, 4
      %s23 = scalar_select %p22, 0, %s21
      %s24 = sadd.s32 1, %s15
      %s25 = scalar_select %p22, %s24, %s15
      %p26 = scmp.ge.s32.totalorder %s25, 1
      %s27 = scalar_select %p26, 0, %s25
      %s29 = sadd.s32 %s28, 1
      %p32 = scmp.eq.s32.totalorder %s8, 3
      %p33 = scmp.ne.s32.totalorder %s28, %s30
      %p34 = scmp.eq.s32.totalorder %s8, 0
      %p35 = por %p33, %p34
      %p36 = scmp.ne.s32.totalorder %s28, %s30
      %p37 = scmp.eq.s32.totalorder %s13, 3
      %p38 = por %p36, %p37
      %p39 = scmp.ne.s32.totalorder %s30, %s31
      %p40 = scmp.eq.s32.totalorder %s13, 0
      %p41 = por %p39, %p40
      %p42 = scmp.ne.s32.totalorder %s30, %s31
      %p43 = scmp.eq.s32.totalorder %s14, 3
      %p44 = por %p42, %p43
      %p46 = scmp.ne.s32.totalorder %s31, %s45
      %p47 = scmp.eq.s32.totalorder %s14, 0
      %p48 = por %p46, %p47
      %s49 = ssub.s32 %s15, %s27
      %s50 = ssub.s32 %s16, %s23
      %s51 = sor.u32 %s49, %s50
      %p52 = scmp.eq.s32.totalorder %s51, 0
      %s54 = sadd.s32 %s53, 1
      %s55 = scalar_select %p52, %s53, %s54
      %p58 = pneg %p52
      %p59 = scmp.eq.s32.totalorder %s8, 3
      %p60 = por %p58, %p59
      %p61 = scmp.ne.s32.totalorder %s53, %s56
      %p62 = scmp.eq.s32.totalorder %s8, 0
      %p63 = por %p61, %p62
      %p64 = scmp.ne.s32.totalorder %s53, %s56
      %p65 = scmp.eq.s32.totalorder %s13, 3
      %p66 = por %p64, %p65
      %p67 = scmp.ne.s32.totalorder %s56, %s57
      %p68 = scmp.eq.s32.totalorder %s13, 0
      %p69 = por %p67, %p68
      %p70 = scmp.ne.s32.totalorder %s56, %s57
      %p71 = scmp.eq.s32.totalorder %s14, 3
      %p72 = por %p70, %p71
      %p74 = scmp.ne.s32.totalorder %s57, %s73
      %p75 = scmp.eq.s32.totalorder %s14, 0
      %p76 = por %p74, %p75
      %s77 = smul.u32 %s16, 3
      %s78 = sadd.s32 %s77, 2
      %s79 = smul.u32 %s23, 3
      %s80 = sadd.s32 %s79, 2
      %s81 = ssub.s32 %s15, %s27
      %s82 = ssub.s32 %s78, %s80
      %s83 = sor.u32 %s81, %s82
      %p84 = scmp.eq.s32.totalorder %s83, 0
      %s86 = sadd.s32 %s85, 1
      %s87 = scalar_select %p84, %s85, %s86
      %p90 = pneg %p84
      %p91 = scmp.eq.s32.totalorder %s8, 3
      %p92 = por %p90, %p91
      %p93 = scmp.ne.s32.totalorder %s85, %s88
      %p94 = scmp.eq.s32.totalorder %s8, 0
      %p95 = por %p93, %p94
      %p96 = scmp.ne.s32.totalorder %s85, %s88
      %p97 = scmp.eq.s32.totalorder %s13, 3
      %p98 = por %p96, %p97
      %p99 = scmp.ne.s32.totalorder %s88, %s89
      %p100 = scmp.eq.s32.totalorder %s13, 0
      %p101 = por %p99, %p100
      %p102 = scmp.ne.s32.totalorder %s88, %s89
      %p103 = scmp.eq.s32.totalorder %s14, 3
      %p104 = por %p102, %p103
      %p106 = scmp.ne.s32.totalorder %s89, %s105
      %p107 = scmp.eq.s32.totalorder %s14, 0
      %p108 = por %p106, %p107
      %p109 = scmp.le.s32.totalorder 1, %s8
      %p110 = scmp.lt.s32.totalorder %s8, 5
      %p111 = pnand %p109, %p110
      %p112 = pneg %p111
      // Predicated region
      $region9: #{_slice_scatter_impl.1} parent=5 // pred_check
        _
      $region10: #{_slice_scatter_impl.1} parent=5 // pred_check_branch
        %114 = sbr.rel (%p111) target = $region12
      $region11: #{_slice_scatter_impl.1} parent=5 // pred_region
        %s115 = ssub.s32 %s8, 1
        // Predicated region
        $region13: #{_slice_scatter_impl.1} parent=11 // pred_check
          %p116 = pneg %p41
        $region14: #{_slice_scatter_impl.1} parent=11 // pred_check_branch
          %118 = sbr.rel (%p116) target = $region16
        $region15: #{_slice_scatter_impl.1} parent=11 // pred_region
          _
        $region16: #{_slice_scatter_impl.1} parent=11 // pred_fallthru
          _
      $region12: #{_slice_scatter_impl.1} parent=5 // pred_fallthru
        _
      %p119 = scmp.lt.s32.totalorder %s8, 4
      // Predicated region
      $region17: #{_slice_scatter_impl.1} parent=5 // pred_check
        %p120 = pneg %p119
      $region18: #{_slice_scatter_impl.1} parent=5 // pred_check_branch
        %122 = sbr.rel (%p120) target = $region20
      $region19: #{_slice_scatter_impl.1} parent=5 // pred_region
        // Predicated region
        $region21: #{_slice_scatter_impl.1} parent=19 // pred_check
          %p123 = pneg %p63
        $region22: #{_slice_scatter_impl.1} parent=19 // pred_check_branch
          %125 = sbr.rel (%p123) target = $region24
        $region23: #{_slice_scatter_impl.1} parent=19 // pred_region
          %s126 = sand.u32 %s53, 1
          %s127 = sand.u32 %s53, 1
          %s128 = smul.addr %s127, 8
          %s129 = scalar_lea.vmem [#allocation2], %s128
          %s130 = smul.u32 8, %s15
          %s131 = smul.addr %s130, 4
          %s132 = sadd.s32 %s16, %s131
          %s133 = scalar_lea.vmem %s1, %s132
          // Predicated region
          $region25: #{_slice_scatter_impl.1} parent=23 // pred_check
            _
          $region26: #{_slice_scatter_impl.1} parent=23 // pred_check_branch
            %135 = sbr.rel (0) target = $region28
          $region27: #{_slice_scatter_impl.1} parent=23 // pred_region
            // Predicated region
            $region29: #{_slice_scatter_impl.1} parent=27 // pred_check
              _
            $region30: #{_slice_scatter_impl.1} parent=27 // pred_check_branch
              %137 = sbr.rel target = $region32
            $region31: #{_slice_scatter_impl.1} parent=27 // pred_region
              // Predicated region
              $region44: #{_slice_scatter_impl.1} parent=31 // pred_check
                _
              $region45: #{_slice_scatter_impl.1} parent=31 // pred_check_branch
                %167 = sbr.rel (0) target = $region47
              $region46: #{_slice_scatter_impl.1} parent=31 // pred_region
                loop: start=0, step=1, limit=1
                $region48: #{_slice_scatter_impl.1} parent=46 // loop_pre_header
                  _
                $region49: #{_slice_scatter_impl.1} parent=46 // loop_header
                  %s169 = sphi 0, %s173
                  %p170 = scmp.ge.s32.totalorder %s169, 1
                  %s174 = sphi %s133, %s133
                  %s175 = sphi %s129, %s129
                $region50: #{_slice_scatter_impl.1} parent=46 // loop_header_branch
                  %172 = sbr.rel (%p170) target = $region54
                $region51: #{_slice_scatter_impl.1} parent=46 // loop_body
                  _
                $region52: #{_slice_scatter_impl.1} parent=46 // loop_footer
                  %s173 = sadd.s32 1, %s169
                $region53: #{_slice_scatter_impl.1} parent=46 // loop_footer_branch
                  %168 = sbr.rel target = $region49
                $region54: #{_slice_scatter_impl.1} parent=46 // loop_exit
                  _
                %s177 = ssub.s32 2, 1
                loop: start=0, step=1, limit=1
                $region55: #{_slice_scatter_impl.1} parent=46 // loop_pre_header
                  _
                $region56: #{_slice_scatter_impl.1} parent=46 // loop_header
                  %s179 = sphi 0, %s183
                  %p180 = scmp.ge.s32.totalorder %s179, 1
                  %s184 = sphi %s133, %s133
                  %s185 = sphi %s129, %s129
                $region57: #{_slice_scatter_impl.1} parent=46 // loop_header_branch
                  %182 = sbr.rel (%p180) target = $region61
                $region58: #{_slice_scatter_impl.1} parent=46 // loop_body
                  %v186 = vld [vmem:[%s184] sm:%s177]
                  %187 = vst [vmem:[%s185] sm:%s177] %v186
                  %v188 = vld [vmem:[%s184 + $0x4] sm:%s177]
                  %189 = vst [vmem:[%s185 + $0x1] sm:%s177] %v188
                  %v190 = vld [vmem:[%s184 + $0x8] sm:%s177]
                  %191 = vst [vmem:[%s185 + $0x2] sm:%s177] %v190
                  %v192 = vld [vmem:[%s184 + $0xc] sm:%s177]
                  %193 = vst [vmem:[%s185 + $0x3] sm:%s177] %v192
                  %v194 = vld [vmem:[%s184 + $0x10] sm:%s177]
                  %195 = vst [vmem:[%s185 + $0x4] sm:%s177] %v194
                  %v196 = vld [vmem:[%s184 + $0x14] sm:%s177]
                  %197 = vst [vmem:[%s185 + $0x5] sm:%s177] %v196
                  %v198 = vld [vmem:[%s184 + $0x18] sm:%s177]
                  %199 = vst [vmem:[%s185 + $0x6] sm:%s177] %v198
                  %v200 = vld [vmem:[%s184 + $0x1c] sm:%s177]
                  %201 = vst [vmem:[%s185 + $0x7] sm:%s177] %v200
                $region59: #{_slice_scatter_impl.1} parent=46 // loop_footer
                  %s183 = sadd.s32 1, %s179
                $region60: #{_slice_scatter_impl.1} parent=46 // loop_footer_branch
                  %178 = sbr.rel target = $region56
                $region61: #{_slice_scatter_impl.1} parent=46 // loop_exit
                  _
              $region47: #{_slice_scatter_impl.1} parent=31 // pred_fallthru
                _
            $region32: #{_slice_scatter_impl.1} parent=27 // pred_fallthru
              _
            // Predicated region
            $region33: #{_slice_scatter_impl.1} parent=27 // pred_check
              _
            $region34: #{_slice_scatter_impl.1} parent=27 // pred_check_branch
              %139 = sbr.rel (0) target = $region36
            $region35: #{_slice_scatter_impl.1} parent=27 // pred_region
              %s141 = ssub.s32 2, 1
              loop: start=0, step=1, limit=1
              $region37: #{_slice_scatter_impl.1} parent=35 // loop_pre_header
                _
              $region38: #{_slice_scatter_impl.1} parent=35 // loop_header
                %s143 = sphi 0, %s147
                %p144 = scmp.ge.s32.totalorder %s143, 1
                %s148 = sphi %s133, %s133
                %s149 = sphi %s129, %s129
              $region39: #{_slice_scatter_impl.1} parent=35 // loop_header_branch
                %146 = sbr.rel (%p144) target = $region43
              $region40: #{_slice_scatter_impl.1} parent=35 // loop_body
                %v150 = vld [vmem:[%s148] sm:%s141]
                %151 = vst [vmem:[%s149] sm:%s141] %v150
                %v152 = vld [vmem:[%s148 + $0x4] sm:%s141]
                %153 = vst [vmem:[%s149 + $0x1] sm:%s141] %v152
                %v154 = vld [vmem:[%s148 + $0x8] sm:%s141]
                %155 = vst [vmem:[%s149 + $0x2] sm:%s141] %v154
                %v156 = vld [vmem:[%s148 + $0xc] sm:%s141]
                %157 = vst [vmem:[%s149 + $0x3] sm:%s141] %v156
                %v158 = vld [vmem:[%s148 + $0x10] sm:%s141]
                %159 = vst [vmem:[%s149 + $0x4] sm:%s141] %v158
                %v160 = vld [vmem:[%s148 + $0x14] sm:%s141]
                %161 = vst [vmem:[%s149 + $0x5] sm:%s141] %v160
                %v162 = vld [vmem:[%s148 + $0x18] sm:%s141]
                %163 = vst [vmem:[%s149 + $0x6] sm:%s141] %v162
                %v164 = vld [vmem:[%s148 + $0x1c] sm:%s141]
                %165 = vst [vmem:[%s149 + $0x7] sm:%s141] %v164
              $region41: #{_slice_scatter_impl.1} parent=35 // loop_footer
                %s147 = sadd.s32 1, %s143
              $region42: #{_slice_scatter_impl.1} parent=35 // loop_footer_branch
                %142 = sbr.rel target = $region38
              $region43: #{_slice_scatter_impl.1} parent=35 // loop_exit
                _
            $region36: #{_slice_scatter_impl.1} parent=27 // pred_fallthru
              _
          $region28: #{_slice_scatter_impl.1} parent=23 // pred_fallthru
            _
          %202 = vnop
        $region24: #{_slice_scatter_impl.1} parent=19 // pred_fallthru
          _
      $region20: #{_slice_scatter_impl.1} parent=5 // pred_fallthru
        _
      %p203 = scmp.le.s32.totalorder 1, %s8
      %p204 = scmp.lt.s32.totalorder %s8, 5
      %p205 = pnand %p203, %p204
      %p206 = pneg %p205
      // Predicated region
      $region62: #{_slice_scatter_impl.1} parent=5 // pred_check
        _
      $region63: #{_slice_scatter_impl.1} parent=5 // pred_check_branch
        %208 = sbr.rel (%p205) target = $region65
      $region64: #{_slice_scatter_impl.1} parent=5 // pred_region
        %s209 = ssub.s32 %s8, 1
        %s210 = sand.u32 %s56, 1
        %s211 = sand.u32 %s56, 1
        %s212 = smul.addr %s211, 8
        %s213 = scalar_lea.vmem [#allocation2], %s212
        // Predicated region
        $region66: #{_slice_scatter_impl.1} parent=64 // pred_check
          %p214 = pneg %p69
        $region67: #{_slice_scatter_impl.1} parent=64 // pred_check_branch
          %216 = sbr.rel (%p214) target = $region69
        $region68: #{_slice_scatter_impl.1} parent=64 // pred_region
          _
        $region69: #{_slice_scatter_impl.1} parent=64 // pred_fallthru
          _
        %p217 = pneg %p41
        %p218 = pneg %p38
        %s219 = sand.u32 %s56, 1
        %s220 = sand.u32 %s56, 1
        %s221 = smul.addr %s220, 8
        %s222 = scalar_lea.vmem [#allocation2], %s221
        %p223 = pneg %p69
        %p224 = pneg %p66
        %p225 = pneg %p101
        %p226 = pneg %p98
        %s227 = sand.u32 %s88, 1
        %s228 = sand.u32 %s88, 1
        %s229 = smul.addr %s228, 8
        %s230 = scalar_lea.vmem [#allocation3], %s229
        %s231 = smul.u32 8, %s17
        %s232 = smul.u32 %s18, 3
        %s233 = sadd.s32 %s232, 2
        %s234 = smul.u32 8, %s17
        %v235 = vld [vmem:[%s213] sm:$0x1]
        %v236 = vld [vmem:[%s213 + $0x1] sm:$0x1]
        %v237 = vld [vmem:[%s213 + $0x2] sm:$0x1]
        %v238 = vld [vmem:[%s213 + $0x3] sm:$0x1]
        %v239 = vld [vmem:[%s213 + $0x4] sm:$0x1]
        %v240 = vld [vmem:[%s213 + $0x5] sm:$0x1]
        %v241 = vld [vmem:[%s213 + $0x6] sm:$0x1]
        %v242 = vld [vmem:[%s213 + $0x7] sm:$0x1]
        %vm243 = vcmask 122880
        %244 = vst.msk [vmem:[%s230] sm:$0x1] %vm243, %v235
        %245 = vst.msk [vmem:[%s230 + $0x1] sm:$0x1] %vm243, %v236
        %246 = vst.msk [vmem:[%s230 + $0x2] sm:$0x1] %vm243, %v237
        %247 = vst.msk [vmem:[%s230 + $0x3] sm:$0x1] %vm243, %v238
        %248 = vst.msk [vmem:[%s230 + $0x4] sm:$0x1] %vm243, %v239
        %249 = vst.msk [vmem:[%s230 + $0x5] sm:$0x1] %vm243, %v240
        %250 = vst.msk [vmem:[%s230 + $0x6] sm:$0x1] %vm243, %v241
        %251 = vst.msk [vmem:[%s230 + $0x7] sm:$0x1] %vm243, %v242
        %s252 = sand.u32 %s88, 1
        %s253 = sand.u32 %s88, 1
        %s254 = smul.addr %s253, 8
        %s255 = scalar_lea.vmem [#allocation3], %s254
        // Predicated region
        $region70: #{_slice_scatter_impl.1} parent=64 // pred_check
          %p256 = pneg %p98
        $region71: #{_slice_scatter_impl.1} parent=64 // pred_check_branch
          %258 = sbr.rel (%p256) target = $region73
        $region72: #{_slice_scatter_impl.1} parent=64 // pred_region
          %s259 = smul.u32 %s18, 3
          %s260 = sadd.s32 %s259, 2
          %s261 = smul.u32 8, %s17
          %s262 = smul.addr %s261, 16
          %s263 = sadd.s32 %s260, %s262
          %s264 = scalar_lea.vmem %s2, %s263
          // Predicated region
          $region74: #{_slice_scatter_impl.1} parent=72 // pred_check
            _
          $region75: #{_slice_scatter_impl.1} parent=72 // pred_check_branch
            %266 = sbr.rel (0) target = $region77
          $region76: #{_slice_scatter_impl.1} parent=72 // pred_region
            // Predicated region
            $region78: #{_slice_scatter_impl.1} parent=76 // pred_check
              _
            $region79: #{_slice_scatter_impl.1} parent=76 // pred_check_branch
              %268 = sbr.rel target = $region81
            $region80: #{_slice_scatter_impl.1} parent=76 // pred_region
              // Predicated region
              $region93: #{_slice_scatter_impl.1} parent=80 // pred_check
                _
              $region94: #{_slice_scatter_impl.1} parent=80 // pred_check_branch
                %298 = sbr.rel (0) target = $region96
              $region95: #{_slice_scatter_impl.1} parent=80 // pred_region
                loop: start=0, step=1, limit=1
                $region97: #{_slice_scatter_impl.1} parent=95 // loop_pre_header
                  _
                $region98: #{_slice_scatter_impl.1} parent=95 // loop_header
                  %s300 = sphi 0, %s304
                  %p301 = scmp.ge.s32.totalorder %s300, 1
                  %s305 = sphi %s255, %s255
                  %s306 = sphi %s264, %s264
                $region99: #{_slice_scatter_impl.1} parent=95 // loop_header_branch
                  %303 = sbr.rel (%p301) target = $region103
                $region100: #{_slice_scatter_impl.1} parent=95 // loop_body
                  _
                $region101: #{_slice_scatter_impl.1} parent=95 // loop_footer
                  %s304 = sadd.s32 1, %s300
                $region102: #{_slice_scatter_impl.1} parent=95 // loop_footer_branch
                  %299 = sbr.rel target = $region98
                $region103: #{_slice_scatter_impl.1} parent=95 // loop_exit
                  _
                %s308 = ssub.s32 2, 1
                loop: start=0, step=1, limit=1
                $region104: #{_slice_scatter_impl.1} parent=95 // loop_pre_header
                  _
                $region105: #{_slice_scatter_impl.1} parent=95 // loop_header
                  %s310 = sphi 0, %s314
                  %p311 = scmp.ge.s32.totalorder %s310, 1
                  %s315 = sphi %s255, %s255
                  %s316 = sphi %s264, %s264
                $region106: #{_slice_scatter_impl.1} parent=95 // loop_header_branch
                  %313 = sbr.rel (%p311) target = $region110
                $region107: #{_slice_scatter_impl.1} parent=95 // loop_body
                  %v317 = vld [vmem:[%s315] sm:%s308]
                  %318 = vst [vmem:[%s316] sm:%s308] %v317
                  %v319 = vld [vmem:[%s315 + $0x1] sm:%s308]
                  %320 = vst [vmem:[%s316 + $0x10] sm:%s308] %v319
                  %v321 = vld [vmem:[%s315 + $0x2] sm:%s308]
                  %322 = vst [vmem:[%s316 + $0x20] sm:%s308] %v321
                  %v323 = vld [vmem:[%s315 + $0x3] sm:%s308]
                  %324 = vst [vmem:[%s316 + $0x30] sm:%s308] %v323
                  %v325 = vld [vmem:[%s315 + $0x4] sm:%s308]
                  %326 = vst [vmem:[%s316 + $0x40] sm:%s308] %v325
                  %v327 = vld [vmem:[%s315 + $0x5] sm:%s308]
                  %328 = vst [vmem:[%s316 + $0x50] sm:%s308] %v327
                  %v329 = vld [vmem:[%s315 + $0x6] sm:%s308]
                  %330 = vst [vmem:[%s316 + $0x60] sm:%s308] %v329
                  %v331 = vld [vmem:[%s315 + $0x7] sm:%s308]
                  %332 = vst [vmem:[%s316 + $0x70] sm:%s308] %v331
                $region108: #{_slice_scatter_impl.1} parent=95 // loop_footer
                  %s314 = sadd.s32 1, %s310
                $region109: #{_slice_scatter_impl.1} parent=95 // loop_footer_branch
                  %309 = sbr.rel target = $region105
                $region110: #{_slice_scatter_impl.1} parent=95 // loop_exit
                  _
              $region96: #{_slice_scatter_impl.1} parent=80 // pred_fallthru
                _
            $region81: #{_slice_scatter_impl.1} parent=76 // pred_fallthru
              _
            // Predicated region
            $region82: #{_slice_scatter_impl.1} parent=76 // pred_check
              _
            $region83: #{_slice_scatter_impl.1} parent=76 // pred_check_branch
              %270 = sbr.rel (0) target = $region85
            $region84: #{_slice_scatter_impl.1} parent=76 // pred_region
              %s272 = ssub.s32 2, 1
              loop: start=0, step=1, limit=1
              $region86: #{_slice_scatter_impl.1} parent=84 // loop_pre_header
                _
              $region87: #{_slice_scatter_impl.1} parent=84 // loop_header
                %s274 = sphi 0, %s278
                %p275 = scmp.ge.s32.totalorder %s274, 1
                %s279 = sphi %s255, %s255
                %s280 = sphi %s264, %s264
              $region88: #{_slice_scatter_impl.1} parent=84 // loop_header_branch
                %277 = sbr.rel (%p275) target = $region92
              $region89: #{_slice_scatter_impl.1} parent=84 // loop_body
                %v281 = vld [vmem:[%s279] sm:%s272]
                %282 = vst [vmem:[%s280] sm:%s272] %v281
                %v283 = vld [vmem:[%s279 + $0x1] sm:%s272]
                %284 = vst [vmem:[%s280 + $0x10] sm:%s272] %v283
                %v285 = vld [vmem:[%s279 + $0x2] sm:%s272]
                %286 = vst [vmem:[%s280 + $0x20] sm:%s272] %v285
                %v287 = vld [vmem:[%s279 + $0x3] sm:%s272]
                %288 = vst [vmem:[%s280 + $0x30] sm:%s272] %v287
                %v289 = vld [vmem:[%s279 + $0x4] sm:%s272]
                %290 = vst [vmem:[%s280 + $0x40] sm:%s272] %v289
                %v291 = vld [vmem:[%s279 + $0x5] sm:%s272]
                %292 = vst [vmem:[%s280 + $0x50] sm:%s272] %v291
                %v293 = vld [vmem:[%s279 + $0x6] sm:%s272]
                %294 = vst [vmem:[%s280 + $0x60] sm:%s272] %v293
                %v295 = vld [vmem:[%s279 + $0x7] sm:%s272]
                %296 = vst [vmem:[%s280 + $0x70] sm:%s272] %v295
              $region90: #{_slice_scatter_impl.1} parent=84 // loop_footer
                %s278 = sadd.s32 1, %s274
              $region91: #{_slice_scatter_impl.1} parent=84 // loop_footer_branch
                %273 = sbr.rel target = $region87
              $region92: #{_slice_scatter_impl.1} parent=84 // loop_exit
                _
            $region85: #{_slice_scatter_impl.1} parent=76 // pred_fallthru
              _
          $region77: #{_slice_scatter_impl.1} parent=72 // pred_fallthru
            _
          %333 = vnop
        $region73: #{_slice_scatter_impl.1} parent=64 // pred_fallthru
          _
      $region65: #{_slice_scatter_impl.1} parent=5 // pred_fallthru
        _
      %p334 = scmp.le.s32.totalorder 2, %s8
      // Predicated region
      $region111: #{_slice_scatter_impl.1} parent=5 // pred_check
        %p335 = pneg %p334
      $region112: #{_slice_scatter_impl.1} parent=5 // pred_check_branch
        %337 = sbr.rel (%p335) target = $region114
      $region113: #{_slice_scatter_impl.1} parent=5 // pred_region
        %s338 = ssub.s32 %s8, 2
        // Predicated region
        $region115: #{_slice_scatter_impl.1} parent=113 // pred_check
          %p339 = pneg %p104
        $region116: #{_slice_scatter_impl.1} parent=113 // pred_check_branch
          %341 = sbr.rel (%p339) target = $region118
        $region117: #{_slice_scatter_impl.1} parent=113 // pred_region
          %s342 = sand.u32 %s89, 1
          %s343 = sand.u32 %s89, 1
          %s344 = smul.addr %s343, 8
          %s345 = scalar_lea.vmem [#allocation3], %s344
        $region118: #{_slice_scatter_impl.1} parent=113 // pred_fallthru
          _
      $region114: #{_slice_scatter_impl.1} parent=5 // pred_fallthru
        _
    $region6: #{_slice_scatter_impl.1} parent=1 // loop_footer
      %s12 = sadd.s32 1, %s8
    $region7: #{_slice_scatter_impl.1} parent=1 // loop_footer_branch
      %7 = sbr.rel target = $region3
    $region8: #{_slice_scatter_impl.1} parent=1 // loop_exit
      _

</llo_original>
